<compile_context>
chip_gen: v7x
topology: tpu7x:2x2x1
jax: 0.10.0
libtpu: 0.0.40
codegen_flags: <defaults>
</compile_context>

<pallas_src>
import functools

import jax
import jax.numpy as jnp
from jax.experimental import pallas as pl
from jax.experimental.pallas import tpu as pltpu


def _vmem_limit_bytes():
    cap = 64 * 1024 * 1024                      # conservative default = v7x physical VMEM
    try:
        info = pltpu.get_tpu_info()
        cap = int(getattr(info, "vmem_capacity_bytes", cap) or cap)
    except Exception:
        pass
    return (cap * 3) // 4                       # ~48 MiB on v7x, ~96 MiB on v5e/v6e


_VMEM_LIMIT = _vmem_limit_bytes()
_FC_TN = 2048 if _VMEM_LIMIT >= 80 * 1024 * 1024 else 1024   # weight tile for 4096-wide FCs


# ----------------------------- Pallas kernels ------------------------------ #

def _conv3x3_kernel(x_ref, w_ref, b_ref, o_ref, pad_ref, col_ref, *,
                    N, H, W, Cin, TH, pool):
    # x_ref:   (N, H, W, Cin)        bf16 activations (whole batch)
    # w_ref:   (9*Cin, TC)           bf16 conv weights, BN scale folded in
    # b_ref:   (1, TC)               f32 folded BN/conv bias
    # o_ref:   (N, Ho, Wo, TC)       bf16 output (pooled if pool=True)
    # pad_ref: (N, H+2, W+2, Cin)    bf16 scratch: zero-padded input
    # col_ref: (N, TH, W, 9*Cin)     bf16 scratch: im2col slab for one row strip
    TC = o_ref.shape[-1]

    # Zero only the 1-pixel halo; the interior is overwritten by x below. Rebuilt every
    # grid step (cheap VMEM traffic) so it is correct under megacore partitioning.
    zrow = jnp.zeros((N, 1, W + 2, Cin), x_ref.dtype)
    zcol = jnp.zeros((N, H + 2, 1, Cin), x_ref.dtype)
    pad_ref[:, 0:1, :, :] = zrow
    pad_ref[:, H + 1:H + 2, :, :] = zrow
    pad_ref[:, :, 0:1, :] = zcol
    pad_ref[:, :, W + 1:W + 2, :] = zcol
    pad_ref[:, 1:H + 1, 1:W + 1, :] = x_ref[...]

    bias = b_ref[...]                                         # (1, TC) f32

    for s in range(H // TH):
        y0 = s * TH
        # Build the im2col slab: 9 tap stores, each (N, TH, W, Cin).
        for dy in range(3):
            for dx in range(3):
                t = dy * 3 + dx
                col_ref[:, :, :, t * Cin:(t + 1) * Cin] = \
                    pad_ref[:, y0 + dy:y0 + dy + TH, dx:dx + W, :]
        # Single matmul with K = 9*Cin (full MXU depth), f32 accumulation.
        acc = jnp.dot(col_ref[...].reshape(N * TH * W, 9 * Cin), w_ref[...],
                      preferred_element_type=jnp.float32)
        y = jnp.maximum(acc + bias, 0.0).reshape(N, TH, W, TC)
        if pool:
            r = jnp.maximum(y[:, 0::2], y[:, 1::2])           # (N, TH/2, W,   TC)
            p = jnp.maximum(r[:, :, 0::2, :], r[:, :, 1::2, :])  # (N, TH/2, W/2, TC)
            o_ref[:, y0 // 2:y0 // 2 + TH // 2, :, :] = p.astype(o_ref.dtype)
        else:
            o_ref[:, y0:y0 + TH, :, :] = y.astype(o_ref.dtype)


def conv3x3_bn_relu(x, w, b, *, pool):
    """3x3 stride-1 pad-1 conv (+folded BN) + ReLU (+ fused 2x2 maxpool).

    x: (N, H, W, Cin) bf16, w: (9*Cin, Cout) bf16 (BN scale folded), b: (1, Cout) f32.
    Whole batch per call; grid only over Cout tiles (weights fetched once, megacore
    splits disjoint weight halves on v7x).
    """
    N, H, W, Cin = x.shape
    K, Cout = w.shape
    Ho, Wo = (H // 2, W // 2) if pool else (H, W)

    # Output-channel tile: >=2 tiles on the wide (weight-heavy) layers, lane-dense stores.
    if Cout >= 512:
        tc = 256
    elif Cout >= 256:
        tc = 128
    else:
        tc = Cout

    # Row-strip size: cap the f32 matmul result (N*TH*W, tc) at ~64 KiB.
    TH = H
    min_th = 2 if pool else 1
    while TH > min_th and N * TH * W * tc * 4 > 64 * 1024:
        TH //= 2
    if H % TH != 0 or (pool and TH % 2 != 0):
        TH = H   # fallback for non-power-of-two spatial sizes

    kern = functools.partial(_conv3x3_kernel, N=N, H=H, W=W, Cin=Cin, TH=TH, pool=pool)
    return pl.pallas_call(
        kern,
        out_shape=jax.ShapeDtypeStruct((N, Ho, Wo, Cout), jnp.bfloat16),
        grid=(Cout // tc,),
        in_specs=[
            pl.BlockSpec((N, H, W, Cin), lambda c: (0, 0, 0, 0)),
            pl.BlockSpec((K, tc), lambda c: (0, c)),
            pl.BlockSpec((1, tc), lambda c: (0, c)),
        ],
        out_specs=pl.BlockSpec((N, Ho, Wo, tc), lambda c: (0, 0, 0, c)),
        scratch_shapes=[
            pltpu.VMEM((N, H + 2, W + 2, Cin), jnp.bfloat16),
            pltpu.VMEM((N, TH, W, K), jnp.bfloat16),
        ],
        compiler_params=pltpu.CompilerParams(
            dimension_semantics=("parallel",),
            vmem_limit_bytes=_VMEM_LIMIT),
    )(x, w, b)


def _linear_kernel(x_ref, w_ref, b_ref, o_ref, *, relu):
    y = jnp.dot(x_ref[...], w_ref[...], preferred_element_type=jnp.float32)
    y = y + b_ref[...]
    if relu:
        y = jnp.maximum(y, 0.0)
    o_ref[...] = y.astype(o_ref.dtype)


def linear(x, w, b, *, relu=False, tm=None, tn=None, out_dtype=jnp.bfloat16):
    """y = x @ w + b (PyTorch Linear, weight stored as (in, out)). x: (M, K) bf16."""
    M, K = x.shape
    N = w.shape[1]
    if tm is None or M % tm != 0:
        tm = M
    if tn is None or N % tn != 0:
        tn = N
    kern = functools.partial(_linear_kernel, relu=relu)
    return pl.pallas_call(
        kern,
        out_shape=jax.ShapeDtypeStruct((M, N), out_dtype),
        grid=(M // tm, N // tn),
        in_specs=[
            pl.BlockSpec((tm, K), lambda i, j: (i, 0)),
            pl.BlockSpec((K, tn), lambda i, j: (0, j)),
            pl.BlockSpec((1, tn), lambda i, j: (0, j)),
        ],
        out_specs=pl.BlockSpec((tm, tn), lambda i, j: (i, j)),
        compiler_params=pltpu.CompilerParams(
            dimension_semantics=("parallel", "parallel"),
            vmem_limit_bytes=_VMEM_LIMIT),
    )(x, w, b)


# --------------------------- parameter construction ------------------------ #

_CONV_CFG = [  # (Cin, Cout, maxpool_after)
    (3, 64, False), (64, 64, True),
    (64, 128, False), (128, 128, True),
    (128, 256, False), (256, 256, True),
    (256, 512, False), (512, 512, True),
    (512, 512, False), (512, 512, True),
]
_EPS = 1e-5


def init_params(key, num_classes=1000):
    params = {"convs": [], "linears": [], "num_classes": num_classes}
    for cin, cout, _ in _CONV_CFG:
        key, kw, kb, kg, kbe, km, kv = jax.random.split(key, 7)
        w = jax.random.normal(kw, (3, 3, cin, cout), jnp.float32) * jnp.sqrt(2.0 / (9 * cin))
        conv_b = jax.random.normal(kb, (cout,), jnp.float32) * 0.01
        gamma = jax.random.uniform(kg, (cout,), jnp.float32, 0.8, 1.2)
        beta = jax.random.normal(kbe, (cout,), jnp.float32) * 0.1
        rmean = jax.random.normal(km, (cout,), jnp.float32) * 0.1
        rvar = jax.random.uniform(kv, (cout,), jnp.float32, 0.5, 1.5)
        # fold conv bias + eval-mode BN entirely into the weight (per-Cout scale) and bias
        inv = gamma / jnp.sqrt(rvar + _EPS)
        w_folded = (w * inv.reshape(1, 1, 1, cout)).reshape(9 * cin, cout)
        bias = (beta + (conv_b - rmean) * inv).reshape(1, cout)
        params["convs"].append((w_folded.astype(jnp.bfloat16), bias))

    # classifier; final layer's Cout zero-padded to a multiple of 256 so it can be tiled
    # with lane-dense, pipelined stores (output sliced back in the wrapper).
    ncp = ((num_classes + 255) // 256) * 256
    lin_dims = [(512, 4096, 4096), (4096, 4096, 4096), (4096, num_classes, ncp)]
    for fin, fout, fpad in lin_dims:
        key, kw, kb = jax.random.split(key, 3)
        w = jax.random.normal(kw, (fin, fout), jnp.float32) * jnp.sqrt(1.0 / fin)
        b = jax.random.normal(kb, (fout,), jnp.float32) * 0.01
        if fpad != fout:
            w = jnp.pad(w, ((0, 0), (0, fpad - fout)))
            b = jnp.pad(b, (0, fpad - fout))
        params["linears"].append((w.astype(jnp.bfloat16), b.reshape(1, fpad)))
    return params


# ------------------------------- forward pass ------------------------------ #

def _im2col_3x3(x_nhwc):
    """Wrapper-side im2col for the lane-sparse first layer (Cin=3 -> K=27)."""
    N, H, W, C = x_nhwc.shape
    xp = jnp.pad(x_nhwc, ((0, 0), (1, 1), (1, 1), (0, 0)))
    cols = [xp[:, dy:dy + H, dx:dx + W, :] for dy in range(3) for dx in range(3)]
    return jnp.concatenate(cols, axis=-1).reshape(N * H * W, 9 * C)


def vgg13_forward(params, x_nchw):
    x = jnp.transpose(x_nchw, (0, 2, 3, 1)).astype(jnp.bfloat16)  # NCHW -> NHWC, bf16
    N, H, W, _ = x.shape

    # Layer 1 (Cin=3, lane-sparse): im2col on the wrapper, matmul kernel does conv+BN+ReLU.
    w0, b0 = params["convs"][0]
    x = linear(_im2col_3x3(x), w0, b0, relu=True, tm=256,
               out_dtype=jnp.bfloat16).reshape(N, H, W, w0.shape[1])

    # Remaining conv layers: fused conv + folded-BN + ReLU (+ 2x2 maxpool) kernels.
    for (w, b), (_, _, pool) in zip(params["convs"][1:], _CONV_CFG[1:]):
        x = conv3x3_bn_relu(x, w, b, pool=pool)

    # x is (N, 1, 1, 512) -> (N, 512); same element order as PyTorch's view at 1x1 spatial.
    x = x.reshape(N, 512)
    w1, b1 = params["linears"][0]
    x = linear(x, w1, b1, relu=True, tn=min(_FC_TN, w1.shape[1]),
               out_dtype=jnp.bfloat16)                     # Dropout = identity (eval)
    w2, b2 = params["linears"][1]
    x = linear(x, w2, b2, relu=True, tn=min(_FC_TN, w2.shape[1]),
               out_dtype=jnp.bfloat16)                     # Dropout = identity (eval)
    w3, b3 = params["linears"][2]
    x = linear(x, w3, b3, relu=False, tn=256, out_dtype=jnp.float32)  # final Linear (padded)
    return x[:, :params["num_classes"]]


if __name__ == "__main__":
    key = jax.random.PRNGKey(0)
    key, kx, kp = jax.random.split(key, 3)
    num_classes = 1000
    # VGG13 requires 32x32 spatial so five 2x2 pools reach 1x1 before the 512-wide classifier.
    x = jax.random.normal(kx, (2, 3, 32, 32), jnp.float32)   # NCHW, like PyTorch
    params = init_params(kp, num_classes=num_classes)

    out = vgg13_forward(params, x)
    out = jax.block_until_ready(out)
    assert out.shape == (2, num_classes), out.shape
    assert bool(jnp.all(jnp.isfinite(out)))
    print("KERNEL_OK")
</pallas_src>

<mosaic_0001>
module attributes {stable_mosaic.version = 11 : i64} {
  func.func @_linear_kernel(%arg0: i32, %arg1: i32, %arg2: memref<256x27xbf16, #tpu.memory_space<vmem>>, %arg3: memref<27x64xbf16, #tpu.memory_space<vmem>>, %arg4: memref<1x64xf32, #tpu.memory_space<vmem>>, %arg5: memref<256x64xbf16, #tpu.memory_space<vmem>>) attributes {dimension_semantics = [#tpu.dimension_semantics<parallel>, #tpu.dimension_semantics<parallel>], iteration_bounds = array<i64: 8, 1>, scalar_prefetch = 0 : i64, scratch_operands = 0 : i64, tpu.core_type = #tpu.core_type<tc>, window_params = [{transform_indices = @transform_0, window_bounds = array<i64: 256, 27>}, {transform_indices = @transform_1, window_bounds = array<i64: 27, 64>}, {transform_indices = @transform_2, window_bounds = array<i64: 1, 64>}, {transform_indices = @transform_3, window_bounds = array<i64: 256, 64>}]} {
    %c0 = arith.constant 0 : index
    %c0_0 = arith.constant 0 : index
    %0 = vector.load %arg2[%c0, %c0_0] : memref<256x27xbf16, #tpu.memory_space<vmem>>, vector<256x27xbf16>
    %c0_1 = arith.constant 0 : index
    %c0_2 = arith.constant 0 : index
    %1 = vector.load %arg3[%c0_1, %c0_2] : memref<27x64xbf16, #tpu.memory_space<vmem>>, vector<27x64xbf16>
    %cst = arith.constant dense<0.000000e+00> : vector<256x64xf32>
    %2 = tpu.matmul %0, %1, %cst {dimension_numbers = #tpu.dot_dimension_numbers<[1], [0], [0], [1], [0, 0, 1, 1], [], []>} : vector<256x27xbf16>, vector<27x64xbf16>, vector<256x64xf32> -> vector<256x64xf32>
    %c0_3 = arith.constant 0 : index
    %c0_4 = arith.constant 0 : index
    %3 = vector.load %arg4[%c0_3, %c0_4] : memref<1x64xf32, #tpu.memory_space<vmem>>, vector<1x64xf32>
    %4 = vector.broadcast %3 : vector<1x64xf32> to vector<256x64xf32>
    %5 = arith.addf %2, %4 : vector<256x64xf32>
    %cst_5 = arith.constant 0.000000e+00 : f32
    %6 = vector.broadcast %cst_5 : f32 to vector<256x64xf32>
    %7 = arith.maximumf %5, %6 : vector<256x64xf32>
    %8 = arith.truncf %7 : vector<256x64xf32> to vector<256x64xbf16>
    %c0_6 = arith.constant 0 : index
    %c0_7 = arith.constant 0 : index
    %9 = vector.load %arg5[%c0_6, %c0_7] : memref<256x64xbf16, #tpu.memory_space<vmem>>, vector<256x64xbf16>
    tpu.vector_store %arg5[%c0_6, %c0_7], %8 {strides = array<i32>} : memref<256x64xbf16, #tpu.memory_space<vmem>>, vector<256x64xbf16>,
    return
  }
  func.func @transform_0(%arg0: i32, %arg1: i32) -> (i32, i32) {
    %c0_i32 = arith.constant 0 : i32
    %c0_i32_0 = arith.constant 0 : i32
    return %arg0, %c0_i32 : i32, i32
  }
  func.func @transform_1(%arg0: i32, %arg1: i32) -> (i32, i32) {
    %c0_i32 = arith.constant 0 : i32
    %c0_i32_0 = arith.constant 0 : i32
    return %c0_i32, %arg1 : i32, i32
  }
  func.func @transform_2(%arg0: i32, %arg1: i32) -> (i32, i32) {
    %c0_i32 = arith.constant 0 : i32
    %c0_i32_0 = arith.constant 0 : i32
    return %c0_i32, %arg1 : i32, i32
  }
  func.func @transform_3(%arg0: i32, %arg1: i32) -> (i32, i32) {
    %c0_i32 = arith.constant 0 : i32
    return %arg0, %arg1 : i32, i32
  }
}

</mosaic_0001>

<llo_original>
// kernel: tpu_custom_call.1
$region0: #{tpu_custom_call.1}
  #allocation0 [shape = 'u32[]', space=smem, size = 0x4, offset = 0x4, fixed_abs, tag = 'smem constant byte address 0x4 - core index']
  #allocation1 [shape = 'u32[144,128]{1,0:T(1,128)}', space=vmem, size = 0x12000, scoped, tag = 'internal scratch']
  %s0 = inlined_call_operand.vmem [shape: bf16[2048,27], index: 0, kind: input, shape index: {}]
  %s1 = inlined_call_operand.vmem [shape: bf16[27,64], index: 1, kind: input, shape index: {}]
  %s2 = inlined_call_operand.vmem [shape: f32[1,64], index: 2, kind: input, shape index: {}]
  %s3 = inlined_call_operand.vmem [shape: bf16[2048,64], index: 3, kind: output, shape index: {}]
  %s4 = sld [smem:[#allocation0]]
  $region45: #{tpu_custom_call.1} parent=0
    _
  %s6 = ssub.s32 1, %s4
  %s7 = scalar_select 0, %s6, %s4
  loop: start=0, step=1, limit=10
  $region2: #{tpu_custom_call.1} parent=0 // loop_pre_header
    _
  $region3: #{tpu_custom_call.1} parent=0 // loop_header
    %s9 = sphi 0, %s13
    %p10 = scmp.ge.s32.totalorder %s9, 10
    %s16 = sphi 0, %s28
    %s17 = sphi 0, %s24
    %s18 = sphi 0, %s16
    %s19 = sphi 0, %s17
    %s20 = sphi 0, %s18
    %s21 = sphi 0, %s19
    %s31 = sphi 0, %s33
    %s34 = sphi 0, %s31
    %s35 = sphi 0, %s34
    %s51 = sphi 0, %s35
    %s57 = sphi 0, %s59
    %s60 = sphi 0, %s57
    %s61 = sphi 0, %s60
    %s77 = sphi 0, %s61
    %s83 = sphi 0, %s85
    %s86 = sphi 0, %s83
    %s87 = sphi 0, %s86
    %s103 = sphi 0, %s87
    %s111 = sphi 0, %s113
    %s114 = sphi 0, %s111
    %s115 = sphi 0, %s114
    %s131 = sphi 0, %s115
  $region4: #{tpu_custom_call.1} parent=0 // loop_header_branch
    %12 = sbr.rel (%p10) target = $region8
  $region5: #{tpu_custom_call.1} parent=0 // loop_body
    %s14 = ssub.s32 %s9, 1
    %s15 = ssub.s32 %s9, 2
    %s22 = sadd.s32 1, %s17
    %p23 = scmp.ge.s32.totalorder %s22, 1
    %s24 = scalar_select %p23, 0, %s22
    %s25 = sadd.s32 1, %s16
    %s26 = scalar_select %p23, %s25, %s16
    %p27 = scmp.ge.s32.totalorder %s26, 8
    %s28 = scalar_select %p27, 0, %s26
    %s29 = ssub.s32 %s16, %s28
    %p30 = scmp.eq.s32.totalorder %s29, 0
    %s32 = sadd.s32 %s31, 1
    %s33 = scalar_select %p30, %s31, %s32
    %p36 = pneg %p30
    %p37 = scmp.eq.s32.totalorder %s9, 7
    %p38 = por %p36, %p37
    %p39 = scmp.ne.s32.totalorder %s31, %s34
    %p40 = scmp.eq.s32.totalorder %s9, 0
    %p41 = por %p39, %p40
    %p42 = scmp.ne.s32.totalorder %s31, %s34
    %p43 = scmp.eq.s32.totalorder %s14, 7
    %p44 = por %p42, %p43
    %p45 = scmp.ne.s32.totalorder %s34, %s35
    %p46 = scmp.eq.s32.totalorder %s14, 0
    %p47 = por %p45, %p46
    %p48 = scmp.ne.s32.totalorder %s34, %s35
    %p49 = scmp.eq.s32.totalorder %s15, 7
    %p50 = por %p48, %p49
    %p52 = scmp.ne.s32.totalorder %s35, %s51
    %p53 = scmp.eq.s32.totalorder %s15, 0
    %p54 = por %p52, %p53
    %s55 = ssub.s32 %s17, %s24
    %p56 = scmp.eq.s32.totalorder %s55, 0
    %s58 = sadd.s32 %s57, 1
    %s59 = scalar_select %p56, %s57, %s58
    %p62 = pneg %p56
    %p63 = scmp.eq.s32.totalorder %s9, 7
    %p64 = por %p62, %p63
    %p65 = scmp.ne.s32.totalorder %s57, %s60
    %p66 = scmp.eq.s32.totalorder %s9, 0
    %p67 = por %p65, %p66
    %p68 = scmp.ne.s32.totalorder %s57, %s60
    %p69 = scmp.eq.s32.totalorder %s14, 7
    %p70 = por %p68, %p69
    %p71 = scmp.ne.s32.totalorder %s60, %s61
    %p72 = scmp.eq.s32.totalorder %s14, 0
    %p73 = por %p71, %p72
    %p74 = scmp.ne.s32.totalorder %s60, %s61
    %p75 = scmp.eq.s32.totalorder %s15, 7
    %p76 = por %p74, %p75
    %p78 = scmp.ne.s32.totalorder %s61, %s77
    %p79 = scmp.eq.s32.totalorder %s15, 0
    %p80 = por %p78, %p79
    %s81 = ssub.s32 %s17, %s24
    %p82 = scmp.eq.s32.totalorder %s81, 0
    %s84 = sadd.s32 %s83, 1
    %s85 = scalar_select %p82, %s83, %s84
    %p88 = pneg %p82
    %p89 = scmp.eq.s32.totalorder %s9, 7
    %p90 = por %p88, %p89
    %p91 = scmp.ne.s32.totalorder %s83, %s86
    %p92 = scmp.eq.s32.totalorder %s9, 0
    %p93 = por %p91, %p92
    %p94 = scmp.ne.s32.totalorder %s83, %s86
    %p95 = scmp.eq.s32.totalorder %s14, 7
    %p96 = por %p94, %p95
    %p97 = scmp.ne.s32.totalorder %s86, %s87
    %p98 = scmp.eq.s32.totalorder %s14, 0
    %p99 = por %p97, %p98
    %p100 = scmp.ne.s32.totalorder %s86, %s87
    %p101 = scmp.eq.s32.totalorder %s15, 7
    %p102 = por %p100, %p101
    %p104 = scmp.ne.s32.totalorder %s87, %s103
    %p105 = scmp.eq.s32.totalorder %s15, 0
    %p106 = por %p104, %p105
    %s107 = ssub.s32 %s16, %s28
    %s108 = ssub.s32 %s17, %s24
    %s109 = sor.u32 %s107, %s108
    %p110 = scmp.eq.s32.totalorder %s109, 0
    %s112 = sadd.s32 %s111, 1
    %s113 = scalar_select %p110, %s111, %s112
    %p116 = pneg %p110
    %p117 = scmp.eq.s32.totalorder %s9, 7
    %p118 = por %p116, %p117
    %p119 = scmp.ne.s32.totalorder %s111, %s114
    %p120 = scmp.eq.s32.totalorder %s9, 0
    %p121 = por %p119, %p120
    %p122 = scmp.ne.s32.totalorder %s111, %s114
    %p123 = scmp.eq.s32.totalorder %s14, 7
    %p124 = por %p122, %p123
    %p125 = scmp.ne.s32.totalorder %s114, %s115
    %p126 = scmp.eq.s32.totalorder %s14, 0
    %p127 = por %p125, %p126
    %p128 = scmp.ne.s32.totalorder %s114, %s115
    %p129 = scmp.eq.s32.totalorder %s15, 7
    %p130 = por %p128, %p129
    %p132 = scmp.ne.s32.totalorder %s115, %s131
    %p133 = scmp.eq.s32.totalorder %s15, 0
    %p134 = por %p132, %p133
    %p135 = scmp.le.s32.totalorder 1, %s9
    %p136 = scmp.lt.s32.totalorder %s9, 9
    %p137 = pnand %p135, %p136
    %p138 = pneg %p137
    // Predicated region
    $region9: #{tpu_custom_call.1} parent=5 // pred_check
      _
    $region10: #{tpu_custom_call.1} parent=5 // pred_check_branch
      %140 = sbr.rel (%p137) target = $region12
    $region11: #{tpu_custom_call.1} parent=5 // pred_region
      %s141 = ssub.s32 %s9, 1
      // Predicated region
      $region13: #{tpu_custom_call.1} parent=11 // pred_check
        %p142 = pneg %p73
      $region14: #{tpu_custom_call.1} parent=11 // pred_check_branch
        %144 = sbr.rel (%p142) target = $region16
      $region15: #{tpu_custom_call.1} parent=11 // pred_region
        %p145 = scmp.lt.s32.totalorder %s19, 0
        %s146 = scalar_select %p145, %s19, 0
        %s147 = smul.addr %s146, 4
        %s148 = scalar_lea.vmem %s1, %s147
      $region16: #{tpu_custom_call.1} parent=11 // pred_fallthru
        _
      // Predicated region
      $region17: #{tpu_custom_call.1} parent=11 // pred_check
        %p149 = pneg %p99
      $region18: #{tpu_custom_call.1} parent=11 // pred_check_branch
        %151 = sbr.rel (%p149) target = $region20
      $region19: #{tpu_custom_call.1} parent=11 // pred_region
        %p152 = scmp.lt.s32.totalorder %s19, 0
        %s153 = scalar_select %p152, %s19, 0
        %s154 = scalar_lea.vmem %s2, %s153
      $region20: #{tpu_custom_call.1} parent=11 // pred_fallthru
        _
    $region12: #{tpu_custom_call.1} parent=5 // pred_fallthru
      _
    %p155 = scmp.lt.s32.totalorder %s9, 8
    // Predicated region
    $region21: #{tpu_custom_call.1} parent=5 // pred_check
      %p156 = pneg %p155
    $region22: #{tpu_custom_call.1} parent=5 // pred_check_branch
      %158 = sbr.rel (%p156) target = $region24
    $region23: #{tpu_custom_call.1} parent=5 // pred_region
      // Predicated region
      $region25: #{tpu_custom_call.1} parent=23 // pred_check
        %p159 = pneg %p41
      $region26: #{tpu_custom_call.1} parent=23 // pred_check_branch
        %161 = sbr.rel (%p159) target = $region28
      $region27: #{tpu_custom_call.1} parent=23 // pred_region
        %s162 = smul.u32 32, %s16
        %p163 = scmp.lt.s32.totalorder %s162, 255
        %s164 = scalar_select %p163, %s162, 255
        %s165 = smul.addr %s164, 4
        %s166 = scalar_lea.vmem %s0, %s165
        %s167 = smul.u32 32, %s16
      $region28: #{tpu_custom_call.1} parent=23 // pred_fallthru
        _
    $region24: #{tpu_custom_call.1} parent=5 // pred_fallthru
      _
    %p168 = scmp.le.s32.totalorder 1, %s9
    %p169 = scmp.lt.s32.totalorder %s9, 9
    %p170 = pnand %p168, %p169
    %p171 = pneg %p170
    // Predicated region
    $region29: #{tpu_custom_call.1} parent=5 // pred_check
      _
    $region30: #{tpu_custom_call.1} parent=5 // pred_check_branch
      %173 = sbr.rel (%p170) target = $region32
    $region31: #{tpu_custom_call.1} parent=5 // pred_region
      %s174 = ssub.s32 %s9, 1
      %s175 = smul.u32 32, %s18
      %p176 = scmp.lt.s32.totalorder %s175, 255
      %s177 = scalar_select %p176, %s175, 255
      %s178 = smul.addr %s177, 4
      %s179 = scalar_lea.vmem %s0, %s178
      %p180 = pneg %p47
      %p181 = pneg %p44
      %p182 = scmp.lt.s32.totalorder %s19, 0
      %s183 = scalar_select %p182, %s19, 0
      %s184 = smul.addr %s183, 4
      %s185 = scalar_lea.vmem %s1, %s184
      %p186 = pneg %p73
      %p187 = pneg %p70
      %p188 = scmp.lt.s32.totalorder %s19, 0
      %s189 = scalar_select %p188, %s19, 0
      %s190 = scalar_lea.vmem %s2, %s189
      %p191 = pneg %p99
      %p192 = pneg %p96
      %p193 = pneg %p127
      %p194 = pneg %p124
      %s195 = smul.u32 32, %s18
      %p196 = scmp.lt.s32.totalorder %s195, 255
      %s197 = scalar_select %p196, %s195, 255
      %p198 = scmp.lt.s32.totalorder %s19, 0
      %s199 = scalar_select %p198, %s19, 0
      %s200 = sadd.s32 %s199, %s197
      %s201 = smul.addr %s200, 4
      %s202 = scalar_lea.vmem %s3, %s201
      %s203 = smul.u32 32, %s18
      %p204 = scmp.lt.s32.totalorder %s203, 255
      %s205 = scalar_select %p204, %s203, 255
      %s206 = smul.addr %s205, 4
      %s207 = scalar_lea.vmem %s0, %s206
      %s208 = smul.u32 32, %s18
      %p209 = scmp.lt.s32.totalorder %s19, 0
      %s210 = scalar_select %p209, %s19, 0
      %s211 = smul.addr %s210, 4
      %s212 = scalar_lea.vmem %s1, %s211
      %p213 = scmp.lt.s32.totalorder %s19, 0
      %s214 = scalar_select %p213, %s19, 0
      %s215 = scalar_lea.vmem %s2, %s214
      %s216 = smul.u32 32, %s18
      %p217 = scmp.lt.s32.totalorder %s216, 255
      %s218 = scalar_select %p217, %s216, 255
      %p219 = scmp.lt.s32.totalorder %s19, 0
      %s220 = scalar_select %p219, %s19, 0
      %s221 = sadd.s32 %s220, %s218
      %s222 = smul.addr %s221, 4
      %s223 = scalar_lea.vmem %s3, %s222
      %s224 = smul.u32 32, %s18
      %v226 = vld [vmem:[%s207] sm:$0xf]
      %v227 = vld [vmem:[%s207 + $0x4] sm:$0xf]
      %v228 = vld [vmem:[%s207 + $0x8] sm:$0xf]
      %v229 = vld [vmem:[%s207 + $0xc] sm:$0xf]
      %v230 = vld [vmem:[%s207 + $0x10] sm:$0xf]
      %v231 = vld [vmem:[%s207 + $0x14] sm:$0xf]
      %v232 = vld [vmem:[%s207 + $0x18] sm:$0xf]
      %v233 = vld [vmem:[%s207 + $0x1c] sm:$0xf]
      %v234 = vld [vmem:[%s207 + $0x20] sm:$0xf]
      %v235 = vld [vmem:[%s207 + $0x24] sm:$0xf]
      %v236 = vld [vmem:[%s207 + $0x28] sm:$0xf]
      %v237 = vld [vmem:[%s207 + $0x2c] sm:$0xf]
      %v238 = vld [vmem:[%s207 + $0x30] sm:$0xf]
      %v239 = vld [vmem:[%s207 + $0x34] sm:$0xf]
      %v240 = vld [vmem:[%s207 + $0x38] sm:$0xf]
      %v241 = vld [vmem:[%s207 + $0x3c] sm:$0xf]
      %v242 = vld [vmem:[%s207 + $0x40] sm:$0xf]
      %v243 = vld [vmem:[%s207 + $0x44] sm:$0xf]
      %v244 = vld [vmem:[%s207 + $0x48] sm:$0xf]
      %v245 = vld [vmem:[%s207 + $0x4c] sm:$0xf]
      %v246 = vld [vmem:[%s207 + $0x50] sm:$0xf]
      %v247 = vld [vmem:[%s207 + $0x54] sm:$0xf]
      %v248 = vld [vmem:[%s207 + $0x58] sm:$0xf]
      %v249 = vld [vmem:[%s207 + $0x5c] sm:$0xf]
      %v250 = vld [vmem:[%s207 + $0x60] sm:$0xf]
      %v251 = vld [vmem:[%s207 + $0x64] sm:$0xf]
      %v252 = vld [vmem:[%s207 + $0x68] sm:$0xf]
      %v253 = vld [vmem:[%s207 + $0x6c] sm:$0xf]
      %v254 = vld [vmem:[%s207 + $0x70] sm:$0xf]
      %v255 = vld [vmem:[%s207 + $0x74] sm:$0xf]
      %v256 = vld [vmem:[%s207 + $0x78] sm:$0xf]
      %v257 = vld [vmem:[%s207 + $0x7c] sm:$0xf]
      %v258 = vld [vmem:[%s212] sm:$0xf]
      %v259 = vld [vmem:[%s212 + $0x4] sm:$0xf]
      %v260 = vld [vmem:[%s212 + $0x8] sm:$0xf]
      %v261 = vld [vmem:[%s212 + $0xc] sm:$0x3]
      %v262 = vld [vmem:[%s215] sm:$0x1]
      %v264 = vlaneseq
      %v265 = vshrl.u32 %v264, 7
      %v266 = vsub.s32 0, %v265
      %v267 = vrot.slane %v262, %v266
      %v301 = vunpack.c.l.b16 %v226
      %v302 = vunpack.c.l.b16 %v227
      %v303 = vunpack.c.l.b16 %v228
      %v304 = vunpack.c.l.b16 %v229
      %v305 = vunpack.c.l.b16 %v230
      %v306 = vunpack.c.l.b16 %v231
      %v307 = vunpack.c.l.b16 %v232
      %v308 = vunpack.c.l.b16 %v233
      %v309 = vunpack.c.l.b16 %v234
      %v310 = vunpack.c.l.b16 %v235
      %v311 = vunpack.c.l.b16 %v236
      %v312 = vunpack.c.l.b16 %v237
      %v313 = vunpack.c.l.b16 %v238
      %v314 = vunpack.c.l.b16 %v239
      %v315 = vunpack.c.l.b16 %v240
      %v316 = vunpack.c.l.b16 %v241
      %v317 = vunpack.c.l.b16 %v242
      %v318 = vunpack.c.l.b16 %v243
      %v319 = vunpack.c.l.b16 %v244
      %v320 = vunpack.c.l.b16 %v245
      %v321 = vunpack.c.l.b16 %v246
      %v322 = vunpack.c.l.b16 %v247
      %v323 = vunpack.c.l.b16 %v248
      %v324 = vunpack.c.l.b16 %v249
      %v325 = vunpack.c.l.b16 %v250
      %v326 = vunpack.c.l.b16 %v251
      %v327 = vunpack.c.l.b16 %v252
      %v328 = vunpack.c.l.b16 %v253
      %v329 = vunpack.c.l.b16 %v254
      %v330 = vunpack.c.l.b16 %v255
      %v331 = vunpack.c.l.b16 %v256
      %v332 = vunpack.c.l.b16 %v257
      %v333 = vpack.c.b16 %v302, %v301
      %v334 = vpack.c.b16 %v304, %v303
      %v335 = vpack.c.b16 %v306, %v305
      %v336 = vpack.c.b16 %v308, %v307
      %v337 = vpack.c.b16 %v310, %v309
      %v338 = vpack.c.b16 %v312, %v311
      %v339 = vpack.c.b16 %v314, %v313
      %v340 = vpack.c.b16 %v316, %v315
      %v341 = vpack.c.b16 %v318, %v317
      %v342 = vpack.c.b16 %v320, %v319
      %v343 = vpack.c.b16 %v322, %v321
      %v344 = vpack.c.b16 %v324, %v323
      %v345 = vpack.c.b16 %v326, %v325
      %v346 = vpack.c.b16 %v328, %v327
      %v347 = vpack.c.b16 %v330, %v329
      %v348 = vpack.c.b16 %v332, %v331
      %v353 = vunpack.c.l.b16 %v258
      %v354 = vunpack.c.l.b16 %v259
      %v355 = vunpack.c.l.b16 %v260
      %v356 = vunpack.c.l.b16 %v261
      %v357 = vpack.c.b16 %v354, %v353
      %v358 = vpack.c.b16 %v356, %v355
      %vm360 = vcmask 220160
      %v362 = vsel %vm360, %v333, 0
      %v365 = vsel %vm360, %v334, 0
      %v368 = vsel %vm360, %v335, 0
      %v371 = vsel %vm360, %v336, 0
      %v374 = vsel %vm360, %v337, 0
      %v377 = vsel %vm360, %v338, 0
      %v380 = vsel %vm360, %v339, 0
      %v383 = vsel %vm360, %v340, 0
      %v386 = vsel %vm360, %v341, 0
      %v389 = vsel %vm360, %v342, 0
      %v392 = vsel %vm360, %v343, 0
      %v395 = vsel %vm360, %v344, 0
      %v398 = vsel %vm360, %v345, 0
      %v401 = vsel %vm360, %v346, 0
      %v404 = vsel %vm360, %v347, 0
      %v407 = vsel %vm360, %v348, 0
      %vm409 = vcmask 1044480
      %vm410 = vcmask 1045504
      %v411 = vsel %vm409, 4294967295, 65535
      %v412 = vsel %vm410, %v411, 0
      %v414 = vand.u32 %v358, %v412
      %416 = vmatprep.subr.bf16.mxu0 0
      %417 = vmatpush1.bf16.msra.mxu0 %v357
      %418 = vmatprep.subr.bf16.mxu0 0
      %419 = vmatpush1.bf16.msra.mxu0 %v414
      %420 = vmatprep.subr.bf16.mxu0 0
      %421 = vmatpush1.bf16.msra.mxu0 0
      %422 = vmatprep.subr.bf16.mxu0 0
      %423 = vmatpush1.bf16.msra.mxu0 0
      %424 = vmatprep.subr.bf16.mxu0 0
      %425 = vmatpush1.bf16.msra.mxu0 0
      %426 = vmatprep.subr.bf16.mxu0 0
      %427 = vmatpush1.bf16.msra.mxu0 0
      %428 = vmatprep.subr.bf16.mxu0 0
      %429 = vmatpush1.bf16.msra.mxu0 0
      %430 = vmatprep.subr.bf16.mxu0 0
      %431 = vmatpush1.bf16.msra.mxu0 0
      %432 = vmatprep.subr.bf16.mxu0 0
      %433 = vmatpush1.bf16.msra.mxu0 0
      %434 = vmatprep.subr.bf16.mxu0 0
      %435 = vmatpush1.bf16.msra.mxu0 0
      %436 = vmatprep.subr.bf16.mxu0 0
      %437 = vmatpush1.bf16.msra.mxu0 0
      %438 = vmatprep.subr.bf16.mxu0 0
      %439 = vmatpush1.bf16.msra.mxu0 0
      %440 = vmatprep.subr.bf16.mxu0 0
      %441 = vmatpush1.bf16.msra.mxu0 0
      %442 = vmatprep.subr.bf16.mxu0 0
      %443 = vmatpush1.bf16.msra.mxu0 0
      %444 = vmatprep.subr.bf16.mxu0 0
      %445 = vmatpush1.bf16.msra.mxu0 0
      %446 = vmatprep.subr.bf16.mxu0 0
      %447 = vmatpush1.bf16.msra.mxu0 0
      %448 = vmatprep.mubr.bf16.mxu0 0
      %449 = vmatmul.mubr.bf16.gmra.mrb[0].mxu0 %v362
      %v450 = vpop.f32.mrb[0].mxu0
      %v451 = vadd.f32 %v267, %v450
      %v452 = vpop.f32.mrb[0].mxu0
      %v453 = vpop.f32.mrb[0].mxu0
      %v454 = vadd.f32 %v267, %v453
      %v455 = vpop.f32.mrb[0].mxu0
      %456 = vmatprep.mubr.bf16.mxu0 0
      %457 = vmatmul.mubr.bf16.gmra.mrb[0].mxu0 %v365
      %v458 = vpop.f32.mrb[0].mxu0
      %v459 = vadd.f32 %v267, %v458
      %v460 = vpop.f32.mrb[0].mxu0
      %v461 = vpop.f32.mrb[0].mxu0
      %v462 = vadd.f32 %v267, %v461
      %v463 = vpop.f32.mrb[0].mxu0
      %464 = vmatprep.mubr.bf16.mxu0 0
      %465 = vmatmul.mubr.bf16.gmra.mrb[0].mxu0 %v368
      %v466 = vpop.f32.mrb[0].mxu0
      %v467 = vadd.f32 %v267, %v466
      %v468 = vpop.f32.mrb[0].mxu0
      %v469 = vpop.f32.mrb[0].mxu0
      %v470 = vadd.f32 %v267, %v469
      %v471 = vpop.f32.mrb[0].mxu0
      %472 = vmatprep.mubr.bf16.mxu0 0
      %473 = vmatmul.mubr.bf16.gmra.mrb[0].mxu0 %v371
      %v474 = vpop.f32.mrb[0].mxu0
      %v475 = vadd.f32 %v267, %v474
      %v476 = vpop.f32.mrb[0].mxu0
      %v477 = vpop.f32.mrb[0].mxu0
      %v478 = vadd.f32 %v267, %v477
      %v479 = vpop.f32.mrb[0].mxu0
      %480 = vmatprep.mubr.bf16.mxu0 0
      %481 = vmatmul.mubr.bf16.gmra.mrb[0].mxu0 %v374
      %v482 = vpop.f32.mrb[0].mxu0
      %v483 = vadd.f32 %v267, %v482
      %v484 = vpop.f32.mrb[0].mxu0
      %v485 = vpop.f32.mrb[0].mxu0
      %v486 = vadd.f32 %v267, %v485
      %v487 = vpop.f32.mrb[0].mxu0
      %488 = vmatprep.mubr.bf16.mxu0 0
      %489 = vmatmul.mubr.bf16.gmra.mrb[0].mxu0 %v377
      %v490 = vpop.f32.mrb[0].mxu0
      %v491 = vadd.f32 %v267, %v490
      %v492 = vpop.f32.mrb[0].mxu0
      %v493 = vpop.f32.mrb[0].mxu0
      %v494 = vadd.f32 %v267, %v493
      %v495 = vpop.f32.mrb[0].mxu0
      %496 = vmatprep.mubr.bf16.mxu0 0
      %497 = vmatmul.mubr.bf16.gmra.mrb[0].mxu0 %v380
      %v498 = vpop.f32.mrb[0].mxu0
      %v499 = vadd.f32 %v267, %v498
      %v500 = vpop.f32.mrb[0].mxu0
      %v501 = vpop.f32.mrb[0].mxu0
      %v502 = vadd.f32 %v267, %v501
      %v503 = vpop.f32.mrb[0].mxu0
      %504 = vmatprep.mubr.bf16.mxu0 0
      %505 = vmatmul.mubr.bf16.gmra.mrb[0].mxu0 %v383
      %v506 = vpop.f32.mrb[0].mxu0
      %v507 = vadd.f32 %v267, %v506
      %v508 = vpop.f32.mrb[0].mxu0
      %v509 = vpop.f32.mrb[0].mxu0
      %v510 = vadd.f32 %v267, %v509
      %v511 = vpop.f32.mrb[0].mxu0
      %512 = vmatprep.mubr.bf16.mxu0 0
      %513 = vmatmul.mubr.bf16.gmra.mrb[0].mxu0 %v386
      %v514 = vpop.f32.mrb[0].mxu0
      %v515 = vadd.f32 %v267, %v514
      %v516 = vpop.f32.mrb[0].mxu0
      %v517 = vpop.f32.mrb[0].mxu0
      %v518 = vadd.f32 %v267, %v517
      %v519 = vpop.f32.mrb[0].mxu0
      %520 = vmatprep.mubr.bf16.mxu0 0
      %521 = vmatmul.mubr.bf16.gmra.mrb[0].mxu0 %v389
      %v522 = vpop.f32.mrb[0].mxu0
      %v523 = vadd.f32 %v267, %v522
      %v524 = vpop.f32.mrb[0].mxu0
      %v525 = vpop.f32.mrb[0].mxu0
      %v526 = vadd.f32 %v267, %v525
      %v527 = vpop.f32.mrb[0].mxu0
      %528 = vmatprep.mubr.bf16.mxu0 0
      %529 = vmatmul.mubr.bf16.gmra.mrb[0].mxu0 %v392
      %v530 = vpop.f32.mrb[0].mxu0
      %v531 = vadd.f32 %v267, %v530
      %v532 = vpop.f32.mrb[0].mxu0
      %v533 = vpop.f32.mrb[0].mxu0
      %v534 = vadd.f32 %v267, %v533
      %v535 = vpop.f32.mrb[0].mxu0
      %536 = vmatprep.mubr.bf16.mxu0 0
      %537 = vmatmul.mubr.bf16.gmra.mrb[0].mxu0 %v395
      %v538 = vpop.f32.mrb[0].mxu0
      %v539 = vadd.f32 %v267, %v538
      %v540 = vpop.f32.mrb[0].mxu0
      %v541 = vpop.f32.mrb[0].mxu0
      %v542 = vadd.f32 %v267, %v541
      %v543 = vpop.f32.mrb[0].mxu0
      %544 = vmatprep.mubr.bf16.mxu0 0
      %545 = vmatmul.mubr.bf16.gmra.mrb[0].mxu0 %v398
      %v546 = vpop.f32.mrb[0].mxu0
      %v547 = vadd.f32 %v267, %v546
      %v548 = vpop.f32.mrb[0].mxu0
      %v549 = vpop.f32.mrb[0].mxu0
      %v550 = vadd.f32 %v267, %v549
      %v551 = vpop.f32.mrb[0].mxu0
      %552 = vmatprep.mubr.bf16.mxu0 0
      %553 = vmatmul.mubr.bf16.gmra.mrb[0].mxu0 %v401
      %v554 = vpop.f32.mrb[0].mxu0
      %v555 = vadd.f32 %v267, %v554
      %v556 = vpop.f32.mrb[0].mxu0
      %v557 = vpop.f32.mrb[0].mxu0
      %v558 = vadd.f32 %v267, %v557
      %v559 = vpop.f32.mrb[0].mxu0
      %560 = vmatprep.mubr.bf16.mxu0 0
      %561 = vmatmul.mubr.bf16.gmra.mrb[0].mxu0 %v404
      %v562 = vpop.f32.mrb[0].mxu0
      %v563 = vadd.f32 %v267, %v562
      %v564 = vpop.f32.mrb[0].mxu0
      %v565 = vpop.f32.mrb[0].mxu0
      %v566 = vadd.f32 %v267, %v565
      %v567 = vpop.f32.mrb[0].mxu0
      %568 = vmatprep.mubr.bf16.mxu0 0
      %569 = vmatmul.mubr.bf16.gmra.mrb[0].mxu0 %v407
      %v570 = vpop.f32.mrb[0].mxu0
      %v571 = vadd.f32 %v267, %v570
      %v572 = vpop.f32.mrb[0].mxu0
      %v573 = vpop.f32.mrb[0].mxu0
      %v574 = vadd.f32 %v267, %v573
      %v575 = vpop.f32.mrb[0].mxu0
      %576 = vdwg.mxu0
      %v577 = vmax.f32 %v451, 0.0
      %v578 = vmax.f32 %v454, 0.0
      %v579 = vmax.f32 %v459, 0.0
      %v580 = vmax.f32 %v462, 0.0
      %v581 = vmax.f32 %v467, 0.0
      %v582 = vmax.f32 %v470, 0.0
      %v583 = vmax.f32 %v475, 0.0
      %v584 = vmax.f32 %v478, 0.0
      %v585 = vmax.f32 %v483, 0.0
      %v586 = vmax.f32 %v486, 0.0
      %v587 = vmax.f32 %v491, 0.0
      %v588 = vmax.f32 %v494, 0.0
      %v589 = vmax.f32 %v499, 0.0
      %v590 = vmax.f32 %v502, 0.0
      %v591 = vmax.f32 %v507, 0.0
      %v592 = vmax.f32 %v510, 0.0
      %v593 = vmax.f32 %v515, 0.0
      %v594 = vmax.f32 %v518, 0.0
      %v595 = vmax.f32 %v523, 0.0
      %v596 = vmax.f32 %v526, 0.0
      %v597 = vmax.f32 %v531, 0.0
      %v598 = vmax.f32 %v534, 0.0
      %v599 = vmax.f32 %v539, 0.0
      %v600 = vmax.f32 %v542, 0.0
      %v601 = vmax.f32 %v547, 0.0
      %v602 = vmax.f32 %v550, 0.0
      %v603 = vmax.f32 %v555, 0.0
      %v604 = vmax.f32 %v558, 0.0
      %v605 = vmax.f32 %v563, 0.0
      %v606 = vmax.f32 %v566, 0.0
      %v607 = vmax.f32 %v571, 0.0
      %v608 = vmax.f32 %v574, 0.0
      %v609 = vpack.c.bf16 %v578, %v577
      %v610 = vpack.c.bf16 %v580, %v579
      %v611 = vpack.c.bf16 %v582, %v581
      %v612 = vpack.c.bf16 %v584, %v583
      %v613 = vpack.c.bf16 %v586, %v585
      %v614 = vpack.c.bf16 %v588, %v587
      %v615 = vpack.c.bf16 %v590, %v589
      %v616 = vpack.c.bf16 %v592, %v591
      %v617 = vpack.c.bf16 %v594, %v593
      %v618 = vpack.c.bf16 %v596, %v595
      %v619 = vpack.c.bf16 %v598, %v597
      %v620 = vpack.c.bf16 %v600, %v599
      %v621 = vpack.c.bf16 %v602, %v601
      %v622 = vpack.c.bf16 %v604, %v603
      %v623 = vpack.c.bf16 %v606, %v605
      %v624 = vpack.c.bf16 %v608, %v607
      %v641 = vunpack.c.l.b16 %v609
      %v642 = vunpack.c.h.b16 %v609
      %v643 = vunpack.c.l.b16 %v610
      %v644 = vunpack.c.h.b16 %v610
      %v645 = vunpack.c.l.b16 %v611
      %v646 = vunpack.c.h.b16 %v611
      %v647 = vunpack.c.l.b16 %v612
      %v648 = vunpack.c.h.b16 %v612
      %v649 = vunpack.c.l.b16 %v613
      %v650 = vunpack.c.h.b16 %v613
      %v651 = vunpack.c.l.b16 %v614
      %v652 = vunpack.c.h.b16 %v614
      %v653 = vunpack.c.l.b16 %v615
      %v654 = vunpack.c.h.b16 %v615
      %v655 = vunpack.c.l.b16 %v616
      %v656 = vunpack.c.h.b16 %v616
      %v657 = vunpack.c.l.b16 %v617
      %v658 = vunpack.c.h.b16 %v617
      %v659 = vunpack.c.l.b16 %v618
      %v660 = vunpack.c.h.b16 %v618
      %v661 = vunpack.c.l.b16 %v619
      %v662 = vunpack.c.h.b16 %v619
      %v663 = vunpack.c.l.b16 %v620
      %v664 = vunpack.c.h.b16 %v620
      %v665 = vunpack.c.l.b16 %v621
      %v666 = vunpack.c.h.b16 %v621
      %v667 = vunpack.c.l.b16 %v622
      %v668 = vunpack.c.h.b16 %v622
      %v669 = vunpack.c.l.b16 %v623
      %v670 = vunpack.c.h.b16 %v623
      %v671 = vunpack.c.l.b16 %v624
      %v672 = vunpack.c.h.b16 %v624
      %v673 = vpack.c.b16 %v641, %v641
      %v674 = vpack.c.b16 %v642, %v642
      %v675 = vpack.c.b16 %v643, %v643
      %v676 = vpack.c.b16 %v644, %v644
      %v677 = vpack.c.b16 %v645, %v645
      %v678 = vpack.c.b16 %v646, %v646
      %v679 = vpack.c.b16 %v647, %v647
      %v680 = vpack.c.b16 %v648, %v648
      %v681 = vpack.c.b16 %v649, %v649
      %v682 = vpack.c.b16 %v650, %v650
      %v683 = vpack.c.b16 %v651, %v651
      %v684 = vpack.c.b16 %v652, %v652
      %v685 = vpack.c.b16 %v653, %v653
      %v686 = vpack.c.b16 %v654, %v654
      %v687 = vpack.c.b16 %v655, %v655
      %v688 = vpack.c.b16 %v656, %v656
      %v689 = vpack.c.b16 %v657, %v657
      %v690 = vpack.c.b16 %v658, %v658
      %v691 = vpack.c.b16 %v659, %v659
      %v692 = vpack.c.b16 %v660, %v660
      %v693 = vpack.c.b16 %v661, %v661
      %v694 = vpack.c.b16 %v662, %v662
      %v695 = vpack.c.b16 %v663, %v663
      %v696 = vpack.c.b16 %v664, %v664
      %v697 = vpack.c.b16 %v665, %v665
      %v698 = vpack.c.b16 %v666, %v666
      %v699 = vpack.c.b16 %v667, %v667
      %v700 = vpack.c.b16 %v668, %v668
      %v701 = vpack.c.b16 %v669, %v669
      %v702 = vpack.c.b16 %v670, %v670
      %v703 = vpack.c.b16 %v671, %v671
      %v704 = vpack.c.b16 %v672, %v672
      %vm737 = vcmask 519168
      %738 = vst.msk [vmem:[%s223] sm:$0xf] %vm737, %v673
      %739 = vst.msk [vmem:[%s223 + $0x4] sm:$0xf] %vm737, %v674
      %740 = vst.msk [vmem:[%s223 + $0x8] sm:$0xf] %vm737, %v675
      %741 = vst.msk [vmem:[%s223 + $0xc] sm:$0xf] %vm737, %v676
      %742 = vst.msk [vmem:[%s223 + $0x10] sm:$0xf] %vm737, %v677
      %743 = vst.msk [vmem:[%s223 + $0x14] sm:$0xf] %vm737, %v678
      %744 = vst.msk [vmem:[%s223 + $0x18] sm:$0xf] %vm737, %v679
      %745 = vst.msk [vmem:[%s223 + $0x1c] sm:$0xf] %vm737, %v680
      %746 = vst.msk [vmem:[%s223 + $0x20] sm:$0xf] %vm737, %v681
      %747 = vst.msk [vmem:[%s223 + $0x24] sm:$0xf] %vm737, %v682
      %748 = vst.msk [vmem:[%s223 + $0x28] sm:$0xf] %vm737, %v683
      %749 = vst.msk [vmem:[%s223 + $0x2c] sm:$0xf] %vm737, %v684
      %750 = vst.msk [vmem:[%s223 + $0x30] sm:$0xf] %vm737, %v685
      %751 = vst.msk [vmem:[%s223 + $0x34] sm:$0xf] %vm737, %v686
      %752 = vst.msk [vmem:[%s223 + $0x38] sm:$0xf] %vm737, %v687
      %753 = vst.msk [vmem:[%s223 + $0x3c] sm:$0xf] %vm737, %v688
      %754 = vst.msk [vmem:[%s223 + $0x40] sm:$0xf] %vm737, %v689
      %755 = vst.msk [vmem:[%s223 + $0x44] sm:$0xf] %vm737, %v690
      %756 = vst.msk [vmem:[%s223 + $0x48] sm:$0xf] %vm737, %v691
      %757 = vst.msk [vmem:[%s223 + $0x4c] sm:$0xf] %vm737, %v692
      %758 = vst.msk [vmem:[%s223 + $0x50] sm:$0xf] %vm737, %v693
      %759 = vst.msk [vmem:[%s223 + $0x54] sm:$0xf] %vm737, %v694
      %760 = vst.msk [vmem:[%s223 + $0x58] sm:$0xf] %vm737, %v695
      %761 = vst.msk [vmem:[%s223 + $0x5c] sm:$0xf] %vm737, %v696
      %762 = vst.msk [vmem:[%s223 + $0x60] sm:$0xf] %vm737, %v697
      %763 = vst.msk [vmem:[%s223 + $0x64] sm:$0xf] %vm737, %v698
      %764 = vst.msk [vmem:[%s223 + $0x68] sm:$0xf] %vm737, %v699
      %765 = vst.msk [vmem:[%s223 + $0x6c] sm:$0xf] %vm737, %v700
      %766 = vst.msk [vmem:[%s223 + $0x70] sm:$0xf] %vm737, %v701
      %767 = vst.msk [vmem:[%s223 + $0x74] sm:$0xf] %vm737, %v702
      %768 = vst.msk [vmem:[%s223 + $0x78] sm:$0xf] %vm737, %v703
      %769 = vst.msk [vmem:[%s223 + $0x7c] sm:$0xf] %vm737, %v704
      %s770 = smul.u32 32, %s18
      %p771 = scmp.lt.s32.totalorder %s770, 255
      %s772 = scalar_select %p771, %s770, 255
      %p773 = scmp.lt.s32.totalorder %s19, 0
      %s774 = scalar_select %p773, %s19, 0
      %s775 = sadd.s32 %s774, %s772
      %s776 = smul.addr %s775, 4
      %s777 = scalar_lea.vmem %s3, %s776
      // Predicated region
      $region33: #{tpu_custom_call.1} parent=31 // pred_check
        %p778 = pneg %p124
      $region34: #{tpu_custom_call.1} parent=31 // pred_check_branch
        %780 = sbr.rel (%p778) target = $region36
      $region35: #{tpu_custom_call.1} parent=31 // pred_region
        %s781 = smul.u32 32, %s18
      $region36: #{tpu_custom_call.1} parent=31 // pred_fallthru
        _
    $region32: #{tpu_custom_call.1} parent=5 // pred_fallthru
      _
    %p782 = scmp.le.s32.totalorder 2, %s9
    // Predicated region
    $region37: #{tpu_custom_call.1} parent=5 // pred_check
      %p783 = pneg %p782
    $region38: #{tpu_custom_call.1} parent=5 // pred_check_branch
      %785 = sbr.rel (%p783) target = $region40
    $region39: #{tpu_custom_call.1} parent=5 // pred_region
      %s786 = ssub.s32 %s9, 2
      // Predicated region
      $region41: #{tpu_custom_call.1} parent=39 // pred_check
        %p787 = pneg %p130
      $region42: #{tpu_custom_call.1} parent=39 // pred_check_branch
        %789 = sbr.rel (%p787) target = $region44
      $region43: #{tpu_custom_call.1} parent=39 // pred_region
        %s790 = smul.u32 32, %s20
        %p791 = scmp.lt.s32.totalorder %s790, 255
        %s792 = scalar_select %p791, %s790, 255
        %p793 = scmp.lt.s32.totalorder %s21, 0
        %s794 = scalar_select %p793, %s21, 0
        %s795 = sadd.s32 %s794, %s792
        %s796 = smul.addr %s795, 4
        %s797 = scalar_lea.vmem %s3, %s796
      $region44: #{tpu_custom_call.1} parent=39 // pred_fallthru
        _
    $region40: #{tpu_custom_call.1} parent=5 // pred_fallthru
      _
  $region6: #{tpu_custom_call.1} parent=0 // loop_footer
    %s13 = sadd.s32 1, %s9
  $region7: #{tpu_custom_call.1} parent=0 // loop_footer_branch
    %8 = sbr.rel target = $region3
  $region8: #{tpu_custom_call.1} parent=0 // loop_exit
    _

</llo_original>
